<compile_context>
chip_gen: v7x
topology: tpu7x:2x2x1
jax: 0.10.0
libtpu: 0.0.40
codegen_flags: <defaults>
</compile_context>

<pallas_src>
import functools
import math

import jax
import jax.numpy as jnp
from jax.experimental import pallas as pl
from jax.experimental.pallas import tpu as pltpu


# ---------------------------------------------------------------------------
# Kernels
# ---------------------------------------------------------------------------

def _pos_enc_kernel_3d(x_ref, pe_ref, o_ref):
    # x_ref/o_ref: (TS, B, D); pe_ref: (TS, D).  pe already in x.dtype.
    # Sublane-broadcast over batch — stride-0/XLU work, free in this
    # HBM-bound kernel; do NOT materialize the broadcast in HBM.
    o_ref[...] = x_ref[...] + pe_ref[...][:, None, :]


def _pos_enc_kernel_2d(x_ref, pe_ref, o_ref, *, batch: int):
    # x_ref/o_ref: (TS, B*D) lane-dense view; pe_ref: (TS, D).
    # Replicate pe across lanes on-chip (cheap; XLU/VPU have huge slack).
    o_ref[...] = x_ref[...] + jnp.tile(pe_ref[...], (1, batch))


# ---------------------------------------------------------------------------
# PE table (matches torch buffer construction)
# ---------------------------------------------------------------------------

def make_sinusoidal_pe(block_size: int, embed_dim: int) -> jnp.ndarray:
    """Sinusoidal positional-encoding table, shape (block_size, embed_dim)."""
    position = jnp.arange(block_size, dtype=jnp.float32)[:, None]           # (L, 1)
    div_term = jnp.exp(
        jnp.arange(0, embed_dim, 2, dtype=jnp.float32)
        * (-math.log(10000.0) / embed_dim)
    )                                                                        # (ceil(D/2),)
    pe = jnp.zeros((block_size, embed_dim), dtype=jnp.float32)
    pe = pe.at[:, 0::2].set(jnp.sin(position * div_term))
    # cos fills floor(D/2) columns — slice div_term so odd embed_dim works.
    pe = pe.at[:, 1::2].set(jnp.cos(position * div_term[: embed_dim // 2]))
    return pe


# ---------------------------------------------------------------------------
# Tiling heuristics
# ---------------------------------------------------------------------------

_TARGET_TILE_BYTES = 3 * 1024 * 1024          # per x tile; safe on v5e/v6e/v7x
_VMEM_LIMIT_BYTES = 32 * 1024 * 1024          # >= working set, <= v7x physical


def _sublane_multiple(itemsize: int) -> int:
    # 8 for 4-byte, 16 for 2-byte, 32 for 1-byte dtypes.
    return 8 * max(1, 4 // max(1, itemsize))


def _choose_tile_rows(S: int, row_bytes: int, sublane: int,
                      target_bytes: int = _TARGET_TILE_BYTES) -> int:
    """Seq-tile size: ~target_bytes per x tile, >=2 grid steps when possible,
    rounded to a sublane multiple so the 2D (TS, B*D) block stays dense."""
    ts = max(1, target_bytes // max(1, row_bytes))
    ts = min(ts, pl.cdiv(S, 2))                # leave work for both v7x TCs
    if ts >= sublane:
        ts = (ts // sublane) * sublane         # sublane-aligned block rows
    else:
        ts = S                                 # too small to split: one full block
    return int(min(ts, S))


# ---------------------------------------------------------------------------
# Wrapper
# ---------------------------------------------------------------------------

def positional_encoding(x: jnp.ndarray, pe_table: jnp.ndarray, *,
                        in_place: bool = False) -> jnp.ndarray:
    """x: (seq_len, batch, embed_dim); pe_table: (block_size, embed_dim).

    If in_place=True the input buffer is aliased into the output
    (input_output_aliases) — the caller must not reuse x afterwards.
    """
    S, B, D = x.shape
    if S > pe_table.shape[0]:
        raise ValueError(
            f"seq_len={S} exceeds positional-encoding table block_size="
            f"{pe_table.shape[0]}")
    if D != pe_table.shape[1]:
        raise ValueError("embed_dim mismatch between x and pe_table")

    # Equivalent of `self.pe[:x.size(0), :]`, stored once in the activation dtype.
    pe_slice = pe_table[:S, :].astype(x.dtype)

    itemsize = jnp.dtype(x.dtype).itemsize
    sublane = _sublane_multiple(itemsize)
    row_bytes = B * D * itemsize
    ts = _choose_tile_rows(S, row_bytes, sublane)
    grid = (pl.cdiv(S, ts),)

    aliases = {0: 0} if in_place else {}
    compiler_params = pltpu.CompilerParams(
        dimension_semantics=("parallel",),
        vmem_limit_bytes=_VMEM_LIMIT_BYTES,
    )

    # Dense-in-3D only when the (B, D) minor tile fills sublanes and lanes.
    dense_3d = (B % sublane == 0) and (D % 128 == 0)

    if dense_3d:
        out = pl.pallas_call(
            _pos_enc_kernel_3d,
            out_shape=jax.ShapeDtypeStruct((S, B, D), x.dtype),
            grid=grid,
            in_specs=[
                pl.BlockSpec((ts, B, D), lambda i: (i, 0, 0)),
                pl.BlockSpec((ts, D), lambda i: (i, 0)),
            ],
            out_specs=pl.BlockSpec((ts, B, D), lambda i: (i, 0, 0)),
            input_output_aliases=aliases,
            compiler_params=compiler_params,
        )(x, pe_slice)
        return out

    # Lane-dense 2D path: view x/out as (S, B*D); replicate pe on-chip.
    x2 = x.reshape(S, B * D)
    out2 = pl.pallas_call(
        functools.partial(_pos_enc_kernel_2d, batch=B),
        out_shape=jax.ShapeDtypeStruct((S, B * D), x.dtype),
        grid=grid,
        in_specs=[
            pl.BlockSpec((ts, B * D), lambda i: (i, 0)),
            pl.BlockSpec((ts, D), lambda i: (i, 0)),
        ],
        out_specs=pl.BlockSpec((ts, B * D), lambda i: (i, 0)),
        input_output_aliases=aliases,
        compiler_params=compiler_params,
    )(x2, pe_slice)
    return out2.reshape(S, B, D)


# ---------------------------------------------------------------------------
# Demo / correctness check
# ---------------------------------------------------------------------------

if __name__ == "__main__":
    key = jax.random.PRNGKey(0)

    # Case 1: small, forward-consistent shapes (exercises the 2D lane-dense
    # path since batch=2 is not a sublane multiple and D=32 < 128).
    block_size, embed_dim, seq_len, batch = 16, 32, 8, 2
    x = jax.random.normal(key, (seq_len, batch, embed_dim), dtype=jnp.float32)
    pe_table = make_sinusoidal_pe(block_size, embed_dim)

    out = jax.block_until_ready(positional_encoding(x, pe_table))
    ref = x + pe_table[:seq_len].astype(x.dtype)[:, None, :]
    assert out.shape == x.shape
    assert jnp.allclose(out, ref, atol=1e-6), "mismatch vs reference (2D path)"

    # Case 2: sublane/lane-aligned shapes (exercises the 3D path and a
    # multi-step grid).
    block_size2, embed_dim2, seq_len2, batch2 = 16, 128, 16, 8
    key2 = jax.random.PRNGKey(0)
    x2 = jax.random.normal(key2, (seq_len2, batch2, embed_dim2), dtype=jnp.float32)
    pe_table2 = make_sinusoidal_pe(block_size2, embed_dim2)

    out2 = jax.block_until_ready(positional_encoding(x2, pe_table2))
    ref2 = x2 + pe_table2[:seq_len2].astype(x2.dtype)[:, None, :]
    assert out2.shape == x2.shape
    assert jnp.allclose(out2, ref2, atol=1e-6), "mismatch vs reference (3D path)"

    print("KERNEL_OK")
</pallas_src>

<mosaic_0001>
module attributes {stable_mosaic.version = 11 : i64} {
  func.func @_pos_enc_kernel_2d(%arg0: i32, %arg1: memref<8x64xf32, #tpu.memory_space<vmem>>, %arg2: memref<8x32xf32, #tpu.memory_space<vmem>>, %arg3: memref<8x64xf32, #tpu.memory_space<vmem>>) attributes {dimension_semantics = [#tpu.dimension_semantics<parallel>], iteration_bounds = array<i64: 1>, scalar_prefetch = 0 : i64, scratch_operands = 0 : i64, tpu.core_type = #tpu.core_type<tc>, window_params = [{transform_indices = @transform_0, window_bounds = array<i64: 8, 64>}, {transform_indices = @transform_1, window_bounds = array<i64: 8, 32>}, {transform_indices = @transform_2, window_bounds = array<i64: 8, 64>}]} {
    %c0 = arith.constant 0 : index
    %c0_0 = arith.constant 0 : index
    %0 = vector.load %arg1[%c0, %c0_0] : memref<8x64xf32, #tpu.memory_space<vmem>>, vector<8x64xf32>
    %c0_1 = arith.constant 0 : index
    %c0_2 = arith.constant 0 : index
    %1 = vector.load %arg2[%c0_1, %c0_2] : memref<8x32xf32, #tpu.memory_space<vmem>>, vector<8x32xf32>
    %2 = tpu.concatenate %1, %1 in 1 : vector<8x32xf32>, vector<8x32xf32> -> vector<8x64xf32>
    %3 = arith.addf %0, %2 : vector<8x64xf32>
    %c0_3 = arith.constant 0 : index
    %c0_4 = arith.constant 0 : index
    %4 = vector.load %arg3[%c0_3, %c0_4] : memref<8x64xf32, #tpu.memory_space<vmem>>, vector<8x64xf32>
    tpu.vector_store %arg3[%c0_3, %c0_4], %3 {strides = array<i32>} : memref<8x64xf32, #tpu.memory_space<vmem>>, vector<8x64xf32>,
    return
  }
  func.func @transform_0(%arg0: i32) -> (i32, i32) {
    %c0_i32 = arith.constant 0 : i32
    %c0_i32_0 = arith.constant 0 : i32
    return %arg0, %c0_i32 : i32, i32
  }
  func.func @transform_1(%arg0: i32) -> (i32, i32) {
    %c0_i32 = arith.constant 0 : i32
    %c0_i32_0 = arith.constant 0 : i32
    return %arg0, %c0_i32 : i32, i32
  }
  func.func @transform_2(%arg0: i32) -> (i32, i32) {
    %c0_i32 = arith.constant 0 : i32
    %c0_i32_0 = arith.constant 0 : i32
    return %arg0, %c0_i32 : i32, i32
  }
}

</mosaic_0001>

<llo_original>
// kernel: tpu_custom_call.1
$region0: #{tpu_custom_call.1}
  #allocation0 [shape = 'u32[]', space=smem, size = 0x4, offset = 0x4, fixed_abs, tag = 'smem constant byte address 0x4 - core index']
  #allocation1 [shape = 'u32[144,128]{1,0:T(1,128)}', space=vmem, size = 0x12000, scoped, tag = 'internal scratch']
  %s0 = inlined_call_operand.hbm [shape: f32[8,64], index: 0, kind: input, shape index: {}]
  %s1 = inlined_call_operand.hbm [shape: f32[8,32], index: 1, kind: input, shape index: {}]
  %s2 = inlined_call_operand.hbm [shape: f32[8,64], index: 2, kind: output, shape index: {}]
  %s3 = sld [smem:[#allocation0]]
  $region26: #{tpu_custom_call.1} parent=0
    _
  %s5 = ssub.s32 1, %s3
  %s6 = scalar_select 0, %s5, %s3
  $region1: #{tpu_custom_call.1} parent=0
    #allocation2 [shape = 'u8[4096]{0}', space=vmem, size = 0x1000, scoped, tag = 'input window, operand 0, single buffered']
    #allocation3 [shape = 's32[1]{0}', space=sflag, size = 0x4, scoped, tag = 'scoped memory for tpu_custom_call.1']
    #allocation4 [shape = 's32[1]{0}', space=sflag, size = 0x4, scoped, tag = 'scoped memory for tpu_custom_call.1']
    #allocation5 [shape = 'u8[4096]{0}', space=vmem, size = 0x1000, scoped, tag = 'input window, operand 1, single buffered']
    #allocation6 [shape = 's32[1]{0}', space=sflag, size = 0x4, scoped, tag = 'scoped memory for tpu_custom_call.1']
    #allocation7 [shape = 'u8[4096]{0}', space=vmem, size = 0x1000, scoped, tag = 'output window, operand 0, single buffered']
    %7 = vsyncpa [#allocation3], 0
    %8 = vsyncpa [#allocation6], 0
    %9 = vsyncpa [#allocation4], 0
    // Predicated region
    $region2: #{tpu_custom_call.1} parent=1 // pred_check
      _
    $region3: #{tpu_custom_call.1} parent=1 // pred_check_branch
      %11 = sbr.rel (0) target = $region5
    $region4: #{tpu_custom_call.1} parent=1 // pred_region
      %s13 = ssub.s32 128, 128
      %14 = vsyncadd [#allocation3], %s13
      %s16 = sshll.u32 [#allocation2], 4
      %s17 = int_to_ptr.vmem [resolvable:$true] %s16
      %19 = dma.hbm_to_vmem [thread:$0]  %s0, 128, %s17, [#allocation3]
    $region5: #{tpu_custom_call.1} parent=1 // pred_fallthru
      _
    // Predicated region
    $region6: #{tpu_custom_call.1} parent=1 // pred_check
      _
    $region7: #{tpu_custom_call.1} parent=1 // pred_check_branch
      %21 = sbr.rel (0) target = $region9
    $region8: #{tpu_custom_call.1} parent=1 // pred_region
      %s23 = ssub.s32 128, 128
      %24 = vsyncadd [#allocation6], %s23
      %s26 = sshll.u32 [#allocation5], 4
      %s27 = int_to_ptr.vmem [resolvable:$true] %s26
      %29 = dma.hbm_to_vmem [thread:$0]  %s1, 128, %s27, [#allocation6]
    $region9: #{tpu_custom_call.1} parent=1 // pred_fallthru
      _
    // Predicated region
    $region10: #{tpu_custom_call.1} parent=1 // pred_check
      _
    $region11: #{tpu_custom_call.1} parent=1 // pred_check_branch
      %31 = sbr.rel (0) target = $region13
    $region12: #{tpu_custom_call.1} parent=1 // pred_region
      %32 = dma.done [#allocation3], 128
    $region13: #{tpu_custom_call.1} parent=1 // pred_fallthru
      _
    // Predicated region
    $region14: #{tpu_custom_call.1} parent=1 // pred_check
      _
    $region15: #{tpu_custom_call.1} parent=1 // pred_check_branch
      %34 = sbr.rel (0) target = $region17
    $region16: #{tpu_custom_call.1} parent=1 // pred_region
      %35 = dma.done [#allocation6], 128
    $region17: #{tpu_custom_call.1} parent=1 // pred_fallthru
      _
    %v36 = vld [vmem:[#allocation2] sm:$0xff]
    %v37 = vld [vmem:[#allocation5] sm:$0xff]
    %39 = vrot.lane.b32.xlu0 %v37, 32
    %v40 = vpop.permute.xlu0 %39
    %vm42 = vcmask 261120
    %v43 = vsel %vm42, %v37, %v40
    %v44 = vadd.f32 %v36, %v43
    %vm45 = vcmask 523264
    %46 = vst.msk [vmem:[#allocation7] sm:$0xff] %vm45, %v44
    // Predicated region
    $region18: #{tpu_custom_call.1} parent=1 // pred_check
      _
    $region19: #{tpu_custom_call.1} parent=1 // pred_check_branch
      %48 = sbr.rel (0) target = $region21
    $region20: #{tpu_custom_call.1} parent=1 // pred_region
      %s50 = ssub.s32 128, 128
      %51 = vsyncadd [#allocation4], %s50
      %s53 = sshll.u32 [#allocation7], 4
      %s54 = int_to_ptr.vmem [resolvable:$true] %s53
      %56 = dma.vmem_to_hbm [thread:$0]  %s54, 128, %s2, [#allocation4]
    $region21: #{tpu_custom_call.1} parent=1 // pred_fallthru
      _
    // Predicated region
    $region22: #{tpu_custom_call.1} parent=1 // pred_check
      _
    $region23: #{tpu_custom_call.1} parent=1 // pred_check_branch
      %58 = sbr.rel (0) target = $region25
    $region24: #{tpu_custom_call.1} parent=1 // pred_region
      %59 = dma.done [#allocation4], 128
    $region25: #{tpu_custom_call.1} parent=1 // pred_fallthru
      _
    %60 = vsyncpa [#allocation3], 1
    %61 = vsyncpa [#allocation6], 1
    %62 = vsyncpa [#allocation4], 1

</llo_original>
